<compile_context>
chip_gen: v6e
topology: v6e:2x2x1
jax: 0.10.0
libtpu: 0.0.40
codegen_flags: <defaults>
</compile_context>

<pallas_src>
import functools

import jax
import jax.numpy as jnp
import numpy as np
from jax.experimental import pallas as pl
from jax.experimental.pallas import tpu as pltpu


def _pooler_classifier_kernel(hidden_ref, mask_ref,
                              w_in_ref, b_in_ref, dec_h_ref,
                              w_c_ref, b_c_ref,
                              logits_ref, attn_ref, *, seq_len):
    btS, H = hidden_ref.shape
    S = seq_len
    bt = btS // S
    Lp = w_c_ref.shape[1]

    # --- HAN pooler projection: one flattened [bt*S, H] MXU matmul -----------
    x2d = hidden_ref[...]                                  # already in the matmul dtype
    proj2d = jnp.tanh(
        (jnp.dot(x2d, w_in_ref[...], preferred_element_type=jnp.float32)
         + b_in_ref[...]).astype(x2d.dtype))               # tanh in the compute dtype

    # --- classifier moved before pooling (associative reorder) ---------------
    # (weights @ proj) @ W_c == weights @ (proj @ W_c): one full-M MXU matmul
    # [bt*S, H] @ [H, Lp] instead of a bt-unrolled M=1 batched matvec.
    projc = jnp.dot(proj2d, w_c_ref[...],
                    preferred_element_type=jnp.float32).reshape(bt, S, Lp)

    # --- attention scores + masked softmax over the sequence (f32 stats) -----
    proj = proj2d.reshape(bt, S, H)                        # S % 8 == 0 -> layout-free split
    scores = jnp.sum(proj * dec_h_ref[...], axis=-1)       # dec_h is f32 -> f32 scores
    valid = mask_ref[...] > 0.5
    scores = jnp.where(valid, scores, -1e30)               # finite fill: all-pad rows stay NaN-free
    smax = jnp.max(scores, axis=-1, keepdims=True)
    e = jnp.exp(scores - smax)
    denom = jnp.sum(e, axis=-1, keepdims=True)
    weights = e * pl.reciprocal(denom, approx=True)        # EUP reciprocal frees VALU slots
    attn_ref[...] = weights

    # --- logits = weights @ projc: lane-broadcast VPU multiply + sublane reduce
    logits_ref[...] = jnp.sum(weights[:, :, None] * projc, axis=1) + b_c_ref[...]


def _choose_batch_tile(batch, seq, hidden, lanes_out, *, feed_bytes, compute_bytes,
                       vmem_budget_bytes):
    """Largest multiple-of-8 batch tile whose kernel working set fits the VMEM budget."""
    per_sample = (
        2 * feed_bytes * seq * hidden        # double-buffered hidden input tile
        + 4 * seq * hidden                   # f32 projection accumulator (pre-tanh)
        + compute_bytes * seq * hidden       # proj kept in the compute dtype
        + 4 * seq * lanes_out                # per-token classifier output (f32)
        + 2 * 4 * seq                        # attention-weights output double buffer
        + 2 * 4 * seq                        # mask double buffer
        + 2 * 4 * lanes_out)                 # logits double buffer
    resident = (2 * compute_bytes * hidden * hidden        # W_in (double-buffered)
                + 2 * compute_bytes * hidden * lanes_out   # W_c (double-buffered)
                + 8 * 4 * (2 * hidden + 2 * lanes_out))    # small vectors (sublane-padded)
    avail = max(vmem_budget_bytes - resident, 8 * per_sample)
    bt = max(8, (avail // per_sample) // 8 * 8)
    b8 = ((batch + 7) // 8) * 8
    return int(min(bt, b8))


def bert_pretrained_classifier_forward(hidden, mask, labels, params, *,
                                       b_tile=None, matmul_dtype=jnp.bfloat16,
                                       min_grid_steps=4, vmem_limit_bytes=None):
    """hidden: [B,S,H] (frozen-BERT output), mask: [B,S] (1/0), labels: [B] int32."""
    B, S, H = hidden.shape
    assert S % 8 == 0, "sequence length must be a multiple of 8 (sublane tiling)"
    L = params["w_c"].shape[1]
    Lp = max(128, ((L + 127) // 128) * 128)          # lane-dense classifier / logits width

    # Generation-aware VMEM budgets (v7x: 64 MiB/TC, v5e/v6e: 128 MiB).
    try:
        vmem_cap = int(pltpu.get_tpu_info().vmem_capacity_bytes)
    except Exception:
        vmem_cap = 64 << 20                          # v7x-safe fallback
    if vmem_limit_bytes is None:
        vmem_limit_bytes = int(vmem_cap * 0.85)
    vmem_budget = int(vmem_limit_bytes * 0.7)        # headroom for matmul/compiler scratch

    matmul_dtype = jnp.dtype(matmul_dtype)
    cbytes = matmul_dtype.itemsize

    if b_tile is None:
        b_tile = _choose_batch_tile(B, S, H, Lp, feed_bytes=cbytes,
                                    compute_bytes=cbytes,
                                    vmem_budget_bytes=vmem_budget)
        # Keep the grid at least `min_grid_steps` deep (>= 2 tiles per TensorCore on
        # v7x megacore) so DMA/compute overlap and both cores get work.
        b8 = ((B + 7) // 8) * 8
        b_tile = min(b_tile, max(8, (b8 // min_grid_steps) // 8 * 8))
    assert b_tile % 8 == 0, "batch tile must be a multiple of the 8-sublane group"

    # Producer-side narrow feed: halves the dominant hidden HBM->VMEM stream when
    # matmul_dtype is bf16 (in production the frozen BERT would emit bf16 directly).
    hidden_feed = hidden.astype(matmul_dtype)
    mask = mask.astype(jnp.float32)

    # Pad the batch to a multiple of the tile; padded rows get an all-zero mask
    # (the -1e30 fill keeps them NaN-free) and are sliced away afterwards.
    Bp = ((B + b_tile - 1) // b_tile) * b_tile
    if Bp != B:
        hidden_feed = jnp.pad(hidden_feed, ((0, Bp - B), (0, 0), (0, 0)))
        mask = jnp.pad(mask, ((0, Bp - B), (0, 0)))
    hidden2d = hidden_feed.reshape(Bp * S, H)        # layout-free merge of leading dims

    # Pre-cast resident weights; zero-pad the classifier to the lane-dense width.
    w_in = params["w_in"].astype(matmul_dtype)
    b_in = params["b_in"].astype(jnp.float32)
    dec_h = params["dec_h"].astype(jnp.float32)      # tiny; kept f32 for score precision
    w_c = jnp.zeros((H, Lp), matmul_dtype).at[:, :L].set(params["w_c"].astype(matmul_dtype))
    b_c = jnp.zeros((1, Lp), jnp.float32).at[:, :L].set(params["b_c"].astype(jnp.float32))

    grid_spec = pltpu.PrefetchScalarGridSpec(
        num_scalar_prefetch=0,
        grid=(Bp // b_tile,),
        in_specs=[
            pl.BlockSpec((b_tile * S, H), lambda b: (b, 0)),   # hidden tokens (batch-tiled)
            pl.BlockSpec((b_tile, S), lambda b: (b, 0)),       # mask (batch-tiled)
            # NOTE: pipeline_mode=pl.Buffered(1) would single-buffer the resident weights
            # below; left at the default for broad jax-version compatibility.
            pl.BlockSpec((H, H), lambda b: (0, 0)),            # W_in  (VMEM-resident)
            pl.BlockSpec((1, H), lambda b: (0, 0)),            # b_in
            pl.BlockSpec((1, H), lambda b: (0, 0)),            # decoder_h
            pl.BlockSpec((H, Lp), lambda b: (0, 0)),           # W_c  (lane-padded)
            pl.BlockSpec((1, Lp), lambda b: (0, 0)),           # b_c
        ],
        out_specs=(
            pl.BlockSpec((b_tile, Lp), lambda b: (b, 0)),      # logits (lane-dense)
            pl.BlockSpec((b_tile, S), lambda b: (b, 0)),       # attention weights
        ),
    )

    logits, attn = pl.pallas_call(
        functools.partial(_pooler_classifier_kernel, seq_len=S),
        out_shape=(
            jax.ShapeDtypeStruct((Bp, Lp), jnp.float32),
            jax.ShapeDtypeStruct((Bp, S), jnp.float32),
        ),
        grid_spec=grid_spec,
        compiler_params=pltpu.CompilerParams(
            dimension_semantics=("parallel",),   # independent batch tiles -> megacore on v7x
            vmem_limit_bytes=vmem_limit_bytes,
        ),
    )(hidden2d, mask, w_in, b_in, dec_h, w_c, b_c)

    logits = logits[:B, :L]
    attn = attn[:B]

    # F.cross_entropy (mean reduction) on the tiny [B, L] logits in plain XLA.
    logp = jax.nn.log_softmax(logits, axis=-1)
    loss = -jnp.mean(jnp.take_along_axis(logp, labels[:, None], axis=-1))
    return loss, logits, attn


def reference_forward(hidden, mask, labels, params):
    """Plain-JAX reference mirroring the PyTorch forward (eval mode)."""
    proj = jnp.tanh(hidden @ params["w_in"] + params["b_in"])
    scores = jnp.einsum("bsh,h->bs", proj, params["dec_h"][0])
    scores = jnp.where(mask > 0.5, scores, -jnp.inf)
    weights = jax.nn.softmax(scores, axis=-1)
    pooled = jnp.einsum("bs,bsh->bh", weights, proj)
    logits = pooled @ params["w_c"] + params["b_c"]
    logp = jax.nn.log_softmax(logits, axis=-1)
    loss = -jnp.mean(jnp.take_along_axis(logp, labels[:, None], axis=-1))
    return loss, logits, weights


if __name__ == "__main__":
    # Small shapes: batch 10 (auto-tiles to b_tile=8 -> two grid steps), seq 16, hidden 32.
    B, S, H, L = 10, 16, 32, 2

    key = jax.random.PRNGKey(0)
    k_hid, k_win, k_bin, k_dec, k_wc, k_bc, k_lab = jax.random.split(key, 7)

    # Synthetic "BERT last hidden states" (the frozen encoder output).
    hidden = jax.random.normal(k_hid, (B, S, H), dtype=jnp.float32)

    # Variable-length attention mask (1.0 = valid token, 0.0 = padding).
    lengths = jnp.array([S, 5, 9, S, 3, 12, S, 7, 1, 10], dtype=jnp.int32)
    mask = (jnp.arange(S)[None, :] < lengths[:, None]).astype(jnp.float32)

    labels = jax.random.randint(k_lab, (B,), 0, L, dtype=jnp.int32)

    params = {
        # pooler.linear_in: nn.Linear(H, H)  (stored pre-transposed as [in, out])
        "w_in": jax.random.normal(k_win, (H, H), dtype=jnp.float32) * 0.1,
        "b_in": jax.random.normal(k_bin, (1, H), dtype=jnp.float32) * 0.1,
        # pooler.decoder_h: nn.Parameter(torch.randn(H))
        "dec_h": jax.random.normal(k_dec, (1, H), dtype=jnp.float32),
        # classifier: nn.Linear(H, label_size) (pre-transposed), no activation
        "w_c": jax.random.normal(k_wc, (H, L), dtype=jnp.float32) * 0.1,
        "b_c": jax.random.normal(k_bc, (1, L), dtype=jnp.float32) * 0.1,
    }

    ref_loss, ref_logits, ref_attn = reference_forward(hidden, mask, labels, params)

    # f32 path (exact up to the EUP approximate reciprocal in the softmax).
    loss, logits, attn = bert_pretrained_classifier_forward(
        hidden, mask, labels, params, matmul_dtype=jnp.float32)
    jax.block_until_ready((loss, logits, attn))
    np.testing.assert_allclose(np.asarray(loss), np.asarray(ref_loss), rtol=2e-2, atol=2e-2)
    np.testing.assert_allclose(np.asarray(logits), np.asarray(ref_logits), rtol=2e-2, atol=2e-2)
    np.testing.assert_allclose(np.asarray(attn), np.asarray(ref_attn), rtol=2e-2, atol=2e-2)

    # bf16-feed path (production default on v5e/v6e/v7x: bf16 HBM stream + bf16 MXU feed,
    # f32 accumulation). Looser tolerance.
    loss16, logits16, attn16 = bert_pretrained_classifier_forward(
        hidden, mask, labels, params, matmul_dtype=jnp.bfloat16)
    jax.block_until_ready((loss16, logits16, attn16))
    np.testing.assert_allclose(np.asarray(loss16), np.asarray(ref_loss), rtol=1e-1, atol=1e-1)
    np.testing.assert_allclose(np.asarray(logits16), np.asarray(ref_logits), rtol=1e-1, atol=1e-1)

    print("KERNEL_OK")
</pallas_src>

<mosaic_0001>
module attributes {stable_mosaic.version = 11 : i64} {
  func.func @_pooler_classifier_kernel(%arg0: i32, %arg1: memref<128x32xf32, #tpu.memory_space<vmem>>, %arg2: memref<8x16xf32, #tpu.memory_space<vmem>>, %arg3: memref<32x32xf32, #tpu.memory_space<vmem>>, %arg4: memref<1x32xf32, #tpu.memory_space<vmem>>, %arg5: memref<1x32xf32, #tpu.memory_space<vmem>>, %arg6: memref<32x128xf32, #tpu.memory_space<vmem>>, %arg7: memref<1x128xf32, #tpu.memory_space<vmem>>, %arg8: memref<8x128xf32, #tpu.memory_space<vmem>>, %arg9: memref<8x16xf32, #tpu.memory_space<vmem>>) attributes {dimension_semantics = [#tpu.dimension_semantics<parallel>], iteration_bounds = array<i64: 2>, scalar_prefetch = 0 : i64, scratch_operands = 0 : i64, tpu.core_type = #tpu.core_type<tc>, window_params = [{transform_indices = @transform_0, window_bounds = array<i64: 128, 32>}, {transform_indices = @transform_1, window_bounds = array<i64: 8, 16>}, {pipeline_mode = #tpu.pipeline_mode<synchronous>, transform_indices = @transform_2, window_bounds = array<i64: 32, 32>}, {pipeline_mode = #tpu.pipeline_mode<synchronous>, transform_indices = @transform_3, window_bounds = array<i64: 1, 32>}, {pipeline_mode = #tpu.pipeline_mode<synchronous>, transform_indices = @transform_4, window_bounds = array<i64: 1, 32>}, {pipeline_mode = #tpu.pipeline_mode<synchronous>, transform_indices = @transform_5, window_bounds = array<i64: 32, 128>}, {pipeline_mode = #tpu.pipeline_mode<synchronous>, transform_indices = @transform_6, window_bounds = array<i64: 1, 128>}, {transform_indices = @transform_7, window_bounds = array<i64: 8, 128>}, {transform_indices = @transform_8, window_bounds = array<i64: 8, 16>}]} {
    %c0 = arith.constant 0 : index
    %c0_0 = arith.constant 0 : index
    %0 = vector.load %arg1[%c0, %c0_0] : memref<128x32xf32, #tpu.memory_space<vmem>>, vector<128x32xf32>
    %c0_1 = arith.constant 0 : index
    %c0_2 = arith.constant 0 : index
    %1 = vector.load %arg3[%c0_1, %c0_2] : memref<32x32xf32, #tpu.memory_space<vmem>>, vector<32x32xf32>
    %cst = arith.constant dense<0.000000e+00> : vector<128x32xf32>
    %2 = tpu.matmul %0, %1, %cst {dimension_numbers = #tpu.dot_dimension_numbers<[1], [0], [0], [1], [0, 0, 1, 1], [], []>} : vector<128x32xf32>, vector<32x32xf32>, vector<128x32xf32> -> vector<128x32xf32>
    %c0_3 = arith.constant 0 : index
    %c0_4 = arith.constant 0 : index
    %3 = vector.load %arg4[%c0_3, %c0_4] : memref<1x32xf32, #tpu.memory_space<vmem>>, vector<1x32xf32>
    %4 = vector.broadcast %3 : vector<1x32xf32> to vector<128x32xf32>
    %5 = arith.addf %2, %4 : vector<128x32xf32>
    %6 = math.tanh %5 : vector<128x32xf32>
    %c0_5 = arith.constant 0 : index
    %c0_6 = arith.constant 0 : index
    %7 = vector.load %arg6[%c0_5, %c0_6] : memref<32x128xf32, #tpu.memory_space<vmem>>, vector<32x128xf32>
    %cst_7 = arith.constant dense<0.000000e+00> : vector<128x128xf32>
    %8 = tpu.matmul %6, %7, %cst_7 {dimension_numbers = #tpu.dot_dimension_numbers<[1], [0], [0], [1], [0, 0, 1, 1], [], []>} : vector<128x32xf32>, vector<32x128xf32>, vector<128x128xf32> -> vector<128x128xf32>
    %9 = vector.shape_cast %8 : vector<128x128xf32> to vector<8x16x128xf32>
    %10 = vector.shape_cast %6 : vector<128x32xf32> to vector<8x16x32xf32>
    %c0_8 = arith.constant 0 : index
    %c0_9 = arith.constant 0 : index
    %11 = vector.load %arg5[%c0_8, %c0_9] : memref<1x32xf32, #tpu.memory_space<vmem>>, vector<1x32xf32>
    %12 = vector.shape_cast %11 : vector<1x32xf32> to vector<1x1x32xf32>
    %13 = vector.broadcast %12 : vector<1x1x32xf32> to vector<8x16x32xf32>
    %14 = arith.mulf %10, %13 : vector<8x16x32xf32>
    %cst_10 = arith.constant dense<0.000000e+00> : vector<8x16xf32>
    %15 = vector.multi_reduction <add>, %14, %cst_10 [2] : vector<8x16x32xf32> to vector<8x16xf32>
    %c0_11 = arith.constant 0 : index
    %c0_12 = arith.constant 0 : index
    %16 = vector.load %arg2[%c0_11, %c0_12] : memref<8x16xf32, #tpu.memory_space<vmem>>, vector<8x16xf32>
    %cst_13 = arith.constant 5.000000e-01 : f32
    %17 = vector.broadcast %cst_13 : f32 to vector<8x16xf32>
    %18 = arith.cmpf ogt, %16, %17 : vector<8x16xf32>
    %cst_14 = arith.constant -1.000000e+30 : f32
    %19 = vector.broadcast %cst_14 : f32 to vector<8x16xf32>
    %20 = arith.select %18, %15, %19 : vector<8x16xi1>, vector<8x16xf32>
    %cst_15 = arith.constant dense<0xFF800000> : vector<8xf32>
    %21 = vector.multi_reduction <maximumf>, %20, %cst_15 [1] : vector<8x16xf32> to vector<8xf32>
    %22 = vector.shape_cast %21 : vector<8xf32> to vector<8x1xf32>
    %23 = vector.broadcast %22 : vector<8x1xf32> to vector<8x16xf32>
    %24 = arith.subf %20, %23 : vector<8x16xf32>
    %25 = math.exp %24 : vector<8x16xf32>
    %cst_16 = arith.constant dense<0.000000e+00> : vector<8xf32>
    %26 = vector.multi_reduction <add>, %25, %cst_16 [1] : vector<8x16xf32> to vector<8xf32>
    %27 = vector.shape_cast %26 : vector<8xf32> to vector<8x1xf32>
    %28 = tpu.reciprocal %27 {approx = true} : vector<8x1xf32> -> vector<8x1xf32>
    %29 = vector.broadcast %28 : vector<8x1xf32> to vector<8x16xf32>
    %30 = arith.mulf %25, %29 : vector<8x16xf32>
    %c0_17 = arith.constant 0 : index
    %c0_18 = arith.constant 0 : index
    %31 = vector.load %arg9[%c0_17, %c0_18] : memref<8x16xf32, #tpu.memory_space<vmem>>, vector<8x16xf32>
    tpu.vector_store %arg9[%c0_17, %c0_18], %30 {strides = array<i32>} : memref<8x16xf32, #tpu.memory_space<vmem>>, vector<8x16xf32>,
    %32 = vector.shape_cast %30 : vector<8x16xf32> to vector<8x16x1xf32>
    %33 = vector.broadcast %32 : vector<8x16x1xf32> to vector<8x16x128xf32>
    %34 = arith.mulf %33, %9 : vector<8x16x128xf32>
    %cst_19 = arith.constant dense<0.000000e+00> : vector<8x128xf32>
    %35 = vector.multi_reduction <add>, %34, %cst_19 [1] : vector<8x16x128xf32> to vector<8x128xf32>
    %c0_20 = arith.constant 0 : index
    %c0_21 = arith.constant 0 : index
    %36 = vector.load %arg7[%c0_20, %c0_21] : memref<1x128xf32, #tpu.memory_space<vmem>>, vector<1x128xf32>
    %37 = vector.broadcast %36 : vector<1x128xf32> to vector<8x128xf32>
    %38 = arith.addf %35, %37 : vector<8x128xf32>
    %c0_22 = arith.constant 0 : index
    %c0_23 = arith.constant 0 : index
    %39 = vector.load %arg8[%c0_22, %c0_23] : memref<8x128xf32, #tpu.memory_space<vmem>>, vector<8x128xf32>
    tpu.vector_store %arg8[%c0_22, %c0_23], %38 {strides = array<i32>} : memref<8x128xf32, #tpu.memory_space<vmem>>, vector<8x128xf32>,
    return
  }
  func.func @transform_0(%arg0: i32) -> (i32, i32) {
    %c0_i32 = arith.constant 0 : i32
    %c0_i32_0 = arith.constant 0 : i32
    return %arg0, %c0_i32 : i32, i32
  }
  func.func @transform_1(%arg0: i32) -> (i32, i32) {
    %c0_i32 = arith.constant 0 : i32
    %c0_i32_0 = arith.constant 0 : i32
    return %arg0, %c0_i32 : i32, i32
  }
  func.func @transform_2(%arg0: i32) -> (i32, i32) {
    %c0_i32 = arith.constant 0 : i32
    %c0_i32_0 = arith.constant 0 : i32
    %c0_i32_1 = arith.constant 0 : i32
    return %c0_i32, %c0_i32_0 : i32, i32
  }
  func.func @transform_3(%arg0: i32) -> (i32, i32) {
    %c0_i32 = arith.constant 0 : i32
    %c0_i32_0 = arith.constant 0 : i32
    %c0_i32_1 = arith.constant 0 : i32
    return %c0_i32, %c0_i32_0 : i32, i32
  }
  func.func @transform_4(%arg0: i32) -> (i32, i32) {
    %c0_i32 = arith.constant 0 : i32
    %c0_i32_0 = arith.constant 0 : i32
    %c0_i32_1 = arith.constant 0 : i32
    return %c0_i32, %c0_i32_0 : i32, i32
  }
  func.func @transform_5(%arg0: i32) -> (i32, i32) {
    %c0_i32 = arith.constant 0 : i32
    %c0_i32_0 = arith.constant 0 : i32
    %c0_i32_1 = arith.constant 0 : i32
    return %c0_i32, %c0_i32_0 : i32, i32
  }
  func.func @transform_6(%arg0: i32) -> (i32, i32) {
    %c0_i32 = arith.constant 0 : i32
    %c0_i32_0 = arith.constant 0 : i32
    %c0_i32_1 = arith.constant 0 : i32
    return %c0_i32, %c0_i32_0 : i32, i32
  }
  func.func @transform_7(%arg0: i32) -> (i32, i32) {
    %c0_i32 = arith.constant 0 : i32
    %c0_i32_0 = arith.constant 0 : i32
    return %arg0, %c0_i32 : i32, i32
  }
  func.func @transform_8(%arg0: i32) -> (i32, i32) {
    %c0_i32 = arith.constant 0 : i32
    %c0_i32_0 = arith.constant 0 : i32
    return %arg0, %c0_i32 : i32, i32
  }
}

</mosaic_0001>

<llo_original>
// kernel: tpu_custom_call.1
$region0: #{tpu_custom_call.1}
  #allocation0 [shape = 'u32[]', space=smem, size = 0x4, offset = 0x4, fixed_abs, tag = 'smem constant byte address 0x4 - core index']
  #allocation1 [shape = 'u32[144,128]{1,0:T(1,128)}', space=vmem, size = 0x12000, scoped, tag = 'internal scratch']
  %s0 = inlined_call_operand.vmem [shape: f32[256,32], index: 0, kind: input, shape index: {}]
  %s1 = inlined_call_operand.vmem [shape: f32[16,16], index: 1, kind: input, shape index: {}]
  %s2 = inlined_call_operand.vmem [shape: f32[32,32], index: 2, kind: input, shape index: {}]
  %s3 = inlined_call_operand.vmem [shape: f32[1,32], index: 3, kind: input, shape index: {}]
  %s4 = inlined_call_operand.vmem [shape: f32[1,32], index: 4, kind: input, shape index: {}]
  %s5 = inlined_call_operand.vmem [shape: f32[32,128], index: 5, kind: input, shape index: {}]
  %s6 = inlined_call_operand.vmem [shape: f32[1,128], index: 6, kind: input, shape index: {}]
  %s7 = inlined_call_operand.hbm [shape: f32[16,128], index: 7, kind: output, shape index: {0}]
  %s8 = inlined_call_operand.hbm [shape: f32[16,16], index: 8, kind: output, shape index: {1}]
  %9 = xla_tuple %s7, %s8
  %s10 = sld [smem:[#allocation0]]
  $region69: #{tpu_custom_call.1} parent=0
    _
  %s12 = ssub.s32 1, %s10
  %s13 = scalar_select 0, %s12, %s10
  $region1: #{tpu_custom_call.1} parent=0
    #allocation2 [shape = 'u8[8192]{0}', space=vmem, size = 0x2000, scoped, tag = 'output window, operand 0']
    #allocation3 [shape = 's32[2]{0}', space=sflag, size = 0x8, scoped, tag = 'scoped memory for tpu_custom_call.1']
    #allocation4 [shape = 'u8[8192]{0}', space=vmem, size = 0x2000, scoped, tag = 'output window, operand 1']
    #allocation5 [shape = 's32[2]{0}', space=sflag, size = 0x8, scoped, tag = 'scoped memory for tpu_custom_call.1']
    %14 = vsyncpa [#allocation3], 0
    %s15 = scalar_lea.sflag [#allocation3], 1
    %16 = vsyncpa %s15, 0
    %17 = vsyncpa [#allocation5], 0
    %s18 = scalar_lea.sflag [#allocation5], 1
    %19 = vsyncpa %s18, 0
    loop: start=0, step=1, limit=4
    $region2: #{tpu_custom_call.1} parent=1 // loop_pre_header
      _
    $region3: #{tpu_custom_call.1} parent=1 // loop_header
      %s21 = sphi 0, %s25
      %p22 = scmp.ge.s32.totalorder %s21, 4
      %s31 = sphi 0, %s33
      %s34 = sphi 0, %s31
      %s35 = sphi 0, %s34
      %s51 = sphi 0, %s35
      %s57 = sphi 0, %s59
      %s60 = sphi 0, %s57
      %s61 = sphi 0, %s60
      %s77 = sphi 0, %s61
      %s81 = sphi 0, %s81
      %s83 = sphi 0, %s81
      %s84 = sphi 0, %s83
      %s98 = sphi 0, %s84
      %s102 = sphi 0, %s102
      %s104 = sphi 0, %s102
      %s105 = sphi 0, %s104
      %s119 = sphi 0, %s105
      %s123 = sphi 0, %s123
      %s125 = sphi 0, %s123
      %s126 = sphi 0, %s125
      %s140 = sphi 0, %s126
      %s144 = sphi 0, %s144
      %s146 = sphi 0, %s144
      %s147 = sphi 0, %s146
      %s161 = sphi 0, %s147
      %s165 = sphi 0, %s165
      %s167 = sphi 0, %s165
      %s168 = sphi 0, %s167
      %s182 = sphi 0, %s168
      %s188 = sphi 0, %s190
      %s191 = sphi 0, %s188
      %s192 = sphi 0, %s191
      %s208 = sphi 0, %s192
      %s214 = sphi 0, %s216
      %s217 = sphi 0, %s214
      %s218 = sphi 0, %s217
      %s234 = sphi 0, %s218
    $region4: #{tpu_custom_call.1} parent=1 // loop_header_branch
      %24 = sbr.rel (%p22) target = $region8
    $region5: #{tpu_custom_call.1} parent=1 // loop_body
      %s26 = ssub.s32 %s21, 1
      %s27 = ssub.s32 %s21, 2
      %s28 = sadd.s32 %s21, 1
      %s29 = ssub.s32 %s21, %s28
      %p30 = scmp.eq.s32.totalorder %s29, 0
      %s32 = sadd.s32 %s31, 1
      %s33 = scalar_select %p30, %s31, %s32
      %p36 = pneg %p30
      %p37 = scmp.eq.s32.totalorder %s21, 1
      %p38 = por %p36, %p37
      %p39 = scmp.ne.s32.totalorder %s31, %s34
      %p40 = scmp.eq.s32.totalorder %s21, 0
      %p41 = por %p39, %p40
      %p42 = scmp.ne.s32.totalorder %s31, %s34
      %p43 = scmp.eq.s32.totalorder %s26, 1
      %p44 = por %p42, %p43
      %p45 = scmp.ne.s32.totalorder %s34, %s35
      %p46 = scmp.eq.s32.totalorder %s26, 0
      %p47 = por %p45, %p46
      %p48 = scmp.ne.s32.totalorder %s34, %s35
      %p49 = scmp.eq.s32.totalorder %s27, 1
      %p50 = por %p48, %p49
      %p52 = scmp.ne.s32.totalorder %s35, %s51
      %p53 = scmp.eq.s32.totalorder %s27, 0
      %p54 = por %p52, %p53
      %s55 = ssub.s32 %s21, %s28
      %p56 = scmp.eq.s32.totalorder %s55, 0
      %s58 = sadd.s32 %s57, 1
      %s59 = scalar_select %p56, %s57, %s58
      %p62 = pneg %p56
      %p63 = scmp.eq.s32.totalorder %s21, 1
      %p64 = por %p62, %p63
      %p65 = scmp.ne.s32.totalorder %s57, %s60
      %p66 = scmp.eq.s32.totalorder %s21, 0
      %p67 = por %p65, %p66
      %p68 = scmp.ne.s32.totalorder %s57, %s60
      %p69 = scmp.eq.s32.totalorder %s26, 1
      %p70 = por %p68, %p69
      %p71 = scmp.ne.s32.totalorder %s60, %s61
      %p72 = scmp.eq.s32.totalorder %s26, 0
      %p73 = por %p71, %p72
      %p74 = scmp.ne.s32.totalorder %s60, %s61
      %p75 = scmp.eq.s32.totalorder %s27, 1
      %p76 = por %p74, %p75
      %p78 = scmp.ne.s32.totalorder %s61, %s77
      %p79 = scmp.eq.s32.totalorder %s27, 0
      %p80 = por %p78, %p79
      %s82 = sadd.s32 %s81, 1
      %p85 = scmp.eq.s32.totalorder %s21, 1
      %p86 = scmp.ne.s32.totalorder %s81, %s83
      %p87 = scmp.eq.s32.totalorder %s21, 0
      %p88 = por %p86, %p87
      %p89 = scmp.ne.s32.totalorder %s81, %s83
      %p90 = scmp.eq.s32.totalorder %s26, 1
      %p91 = por %p89, %p90
      %p92 = scmp.ne.s32.totalorder %s83, %s84
      %p93 = scmp.eq.s32.totalorder %s26, 0
      %p94 = por %p92, %p93
      %p95 = scmp.ne.s32.totalorder %s83, %s84
      %p96 = scmp.eq.s32.totalorder %s27, 1
      %p97 = por %p95, %p96
      %p99 = scmp.ne.s32.totalorder %s84, %s98
      %p100 = scmp.eq.s32.totalorder %s27, 0
      %p101 = por %p99, %p100
      %s103 = sadd.s32 %s102, 1
      %p106 = scmp.eq.s32.totalorder %s21, 1
      %p107 = scmp.ne.s32.totalorder %s102, %s104
      %p108 = scmp.eq.s32.totalorder %s21, 0
      %p109 = por %p107, %p108
      %p110 = scmp.ne.s32.totalorder %s102, %s104
      %p111 = scmp.eq.s32.totalorder %s26, 1
      %p112 = por %p110, %p111
      %p113 = scmp.ne.s32.totalorder %s104, %s105
      %p114 = scmp.eq.s32.totalorder %s26, 0
      %p115 = por %p113, %p114
      %p116 = scmp.ne.s32.totalorder %s104, %s105
      %p117 = scmp.eq.s32.totalorder %s27, 1
      %p118 = por %p116, %p117
      %p120 = scmp.ne.s32.totalorder %s105, %s119
      %p121 = scmp.eq.s32.totalorder %s27, 0
      %p122 = por %p120, %p121
      %s124 = sadd.s32 %s123, 1
      %p127 = scmp.eq.s32.totalorder %s21, 1
      %p128 = scmp.ne.s32.totalorder %s123, %s125
      %p129 = scmp.eq.s32.totalorder %s21, 0
      %p130 = por %p128, %p129
      %p131 = scmp.ne.s32.totalorder %s123, %s125
      %p132 = scmp.eq.s32.totalorder %s26, 1
      %p133 = por %p131, %p132
      %p134 = scmp.ne.s32.totalorder %s125, %s126
      %p135 = scmp.eq.s32.totalorder %s26, 0
      %p136 = por %p134, %p135
      %p137 = scmp.ne.s32.totalorder %s125, %s126
      %p138 = scmp.eq.s32.totalorder %s27, 1
      %p139 = por %p137, %p138
      %p141 = scmp.ne.s32.totalorder %s126, %s140
      %p142 = scmp.eq.s32.totalorder %s27, 0
      %p143 = por %p141, %p142
      %s145 = sadd.s32 %s144, 1
      %p148 = scmp.eq.s32.totalorder %s21, 1
      %p149 = scmp.ne.s32.totalorder %s144, %s146
      %p150 = scmp.eq.s32.totalorder %s21, 0
      %p151 = por %p149, %p150
      %p152 = scmp.ne.s32.totalorder %s144, %s146
      %p153 = scmp.eq.s32.totalorder %s26, 1
      %p154 = por %p152, %p153
      %p155 = scmp.ne.s32.totalorder %s146, %s147
      %p156 = scmp.eq.s32.totalorder %s26, 0
      %p157 = por %p155, %p156
      %p158 = scmp.ne.s32.totalorder %s146, %s147
      %p159 = scmp.eq.s32.totalorder %s27, 1
      %p160 = por %p158, %p159
      %p162 = scmp.ne.s32.totalorder %s147, %s161
      %p163 = scmp.eq.s32.totalorder %s27, 0
      %p164 = por %p162, %p163
      %s166 = sadd.s32 %s165, 1
      %p169 = scmp.eq.s32.totalorder %s21, 1
      %p170 = scmp.ne.s32.totalorder %s165, %s167
      %p171 = scmp.eq.s32.totalorder %s21, 0
      %p172 = por %p170, %p171
      %p173 = scmp.ne.s32.totalorder %s165, %s167
      %p174 = scmp.eq.s32.totalorder %s26, 1
      %p175 = por %p173, %p174
      %p176 = scmp.ne.s32.totalorder %s167, %s168
      %p177 = scmp.eq.s32.totalorder %s26, 0
      %p178 = por %p176, %p177
      %p179 = scmp.ne.s32.totalorder %s167, %s168
      %p180 = scmp.eq.s32.totalorder %s27, 1
      %p181 = por %p179, %p180
      %p183 = scmp.ne.s32.totalorder %s168, %s182
      %p184 = scmp.eq.s32.totalorder %s27, 0
      %p185 = por %p183, %p184
      %s186 = ssub.s32 %s21, %s28
      %p187 = scmp.eq.s32.totalorder %s186, 0
      %s189 = sadd.s32 %s188, 1
      %s190 = scalar_select %p187, %s188, %s189
      %p193 = pneg %p187
      %p194 = scmp.eq.s32.totalorder %s21, 1
      %p195 = por %p193, %p194
      %p196 = scmp.ne.s32.totalorder %s188, %s191
      %p197 = scmp.eq.s32.totalorder %s21, 0
      %p198 = por %p196, %p197
      %p199 = scmp.ne.s32.totalorder %s188, %s191
      %p200 = scmp.eq.s32.totalorder %s26, 1
      %p201 = por %p199, %p200
      %p202 = scmp.ne.s32.totalorder %s191, %s192
      %p203 = scmp.eq.s32.totalorder %s26, 0
      %p204 = por %p202, %p203
      %p205 = scmp.ne.s32.totalorder %s191, %s192
      %p206 = scmp.eq.s32.totalorder %s27, 1
      %p207 = por %p205, %p206
      %p209 = scmp.ne.s32.totalorder %s192, %s208
      %p210 = scmp.eq.s32.totalorder %s27, 0
      %p211 = por %p209, %p210
      %s212 = ssub.s32 %s21, %s28
      %p213 = scmp.eq.s32.totalorder %s212, 0
      %s215 = sadd.s32 %s214, 1
      %s216 = scalar_select %p213, %s214, %s215
      %p219 = pneg %p213
      %p220 = scmp.eq.s32.totalorder %s21, 1
      %p221 = por %p219, %p220
      %p222 = scmp.ne.s32.totalorder %s214, %s217
      %p223 = scmp.eq.s32.totalorder %s21, 0
      %p224 = por %p222, %p223
      %p225 = scmp.ne.s32.totalorder %s214, %s217
      %p226 = scmp.eq.s32.totalorder %s26, 1
      %p227 = por %p225, %p226
      %p228 = scmp.ne.s32.totalorder %s217, %s218
      %p229 = scmp.eq.s32.totalorder %s26, 0
      %p230 = por %p228, %p229
      %p231 = scmp.ne.s32.totalorder %s217, %s218
      %p232 = scmp.eq.s32.totalorder %s27, 1
      %p233 = por %p231, %p232
      %p235 = scmp.ne.s32.totalorder %s218, %s234
      %p236 = scmp.eq.s32.totalorder %s27, 0
      %p237 = por %p235, %p236
      %p238 = scmp.le.s32.totalorder 1, %s21
      %p239 = scmp.lt.s32.totalorder %s21, 3
      %p240 = pnand %p238, %p239
      %p241 = pneg %p240
      // Predicated region
      $region9: #{tpu_custom_call.1} parent=5 // pred_check
        _
      $region10: #{tpu_custom_call.1} parent=5 // pred_check_branch
        %243 = sbr.rel (%p240) target = $region12
      $region11: #{tpu_custom_call.1} parent=5 // pred_region
        %s244 = ssub.s32 %s21, 1
        // Predicated region
        $region13: #{tpu_custom_call.1} parent=11 // pred_check
          %p245 = pneg %p94
        $region14: #{tpu_custom_call.1} parent=11 // pred_check_branch
          %247 = sbr.rel (%p245) target = $region16
        $region15: #{tpu_custom_call.1} parent=11 // pred_region
          _
        $region16: #{tpu_custom_call.1} parent=11 // pred_fallthru
          _
        // Predicated region
        $region17: #{tpu_custom_call.1} parent=11 // pred_check
          %p248 = pneg %p115
        $region18: #{tpu_custom_call.1} parent=11 // pred_check_branch
          %250 = sbr.rel (%p248) target = $region20
        $region19: #{tpu_custom_call.1} parent=11 // pred_region
          _
        $region20: #{tpu_custom_call.1} parent=11 // pred_fallthru
          _
        // Predicated region
        $region21: #{tpu_custom_call.1} parent=11 // pred_check
          %p251 = pneg %p136
        $region22: #{tpu_custom_call.1} parent=11 // pred_check_branch
          %253 = sbr.rel (%p251) target = $region24
        $region23: #{tpu_custom_call.1} parent=11 // pred_region
          _
        $region24: #{tpu_custom_call.1} parent=11 // pred_fallthru
          _
        // Predicated region
        $region25: #{tpu_custom_call.1} parent=11 // pred_check
          %p254 = pneg %p157
        $region26: #{tpu_custom_call.1} parent=11 // pred_check_branch
          %256 = sbr.rel (%p254) target = $region28
        $region27: #{tpu_custom_call.1} parent=11 // pred_region
          _
        $region28: #{tpu_custom_call.1} parent=11 // pred_fallthru
          _
        // Predicated region
        $region29: #{tpu_custom_call.1} parent=11 // pred_check
          %p257 = pneg %p178
        $region30: #{tpu_custom_call.1} parent=11 // pred_check_branch
          %259 = sbr.rel (%p257) target = $region32
        $region31: #{tpu_custom_call.1} parent=11 // pred_region
          _
        $region32: #{tpu_custom_call.1} parent=11 // pred_fallthru
          _
      $region12: #{tpu_custom_call.1} parent=5 // pred_fallthru
        _
      %p260 = scmp.lt.s32.totalorder %s21, 2
      // Predicated region
      $region33: #{tpu_custom_call.1} parent=5 // pred_check
        %p261 = pneg %p260
      $region34: #{tpu_custom_call.1} parent=5 // pred_check_branch
        %263 = sbr.rel (%p261) target = $region36
      $region35: #{tpu_custom_call.1} parent=5 // pred_region
        // Predicated region
        $region37: #{tpu_custom_call.1} parent=35 // pred_check
          %p264 = pneg %p41
        $region38: #{tpu_custom_call.1} parent=35 // pred_check_branch
          %266 = sbr.rel (%p264) target = $region40
        $region39: #{tpu_custom_call.1} parent=35 // pred_region
          %s267 = smul.u32 16, %s21
          %p268 = scmp.lt.s32.totalorder %s267, 31
          %s269 = scalar_select %p268, %s267, 31
          %s270 = smul.addr %s269, 8
          %s271 = scalar_lea.vmem %s0, %s270
          %s272 = smul.u32 16, %s21
        $region40: #{tpu_custom_call.1} parent=35 // pred_fallthru
          _
        // Predicated region
        $region41: #{tpu_custom_call.1} parent=35 // pred_check
          %p273 = pneg %p67
        $region42: #{tpu_custom_call.1} parent=35 // pred_check_branch
          %275 = sbr.rel (%p273) target = $region44
        $region43: #{tpu_custom_call.1} parent=35 // pred_region
          %p276 = scmp.lt.s32.totalorder %s21, 1
          %s277 = scalar_select %p276, %s21, 1
          %s278 = smul.addr %s277, 8
          %s279 = scalar_lea.vmem %s1, %s278
        $region44: #{tpu_custom_call.1} parent=35 // pred_fallthru
          _
      $region36: #{tpu_custom_call.1} parent=5 // pred_fallthru
        _
      %p280 = scmp.le.s32.totalorder 1, %s21
      %p281 = scmp.lt.s32.totalorder %s21, 3
      %p282 = pnand %p280, %p281
      %p283 = pneg %p282
      // Predicated region
      $region45: #{tpu_custom_call.1} parent=5 // pred_check
        _
      $region46: #{tpu_custom_call.1} parent=5 // pred_check_branch
        %285 = sbr.rel (%p282) target = $region48
      $region47: #{tpu_custom_call.1} parent=5 // pred_region
        %s286 = ssub.s32 %s21, 1
        %s287 = smul.u32 16, %s26
        %p288 = scmp.lt.s32.totalorder %s287, 31
        %s289 = scalar_select %p288, %s287, 31
        %s290 = smul.addr %s289, 8
        %s291 = scalar_lea.vmem %s0, %s290
        %p292 = pneg %p47
        %p293 = pneg %p44
        %p294 = scmp.lt.s32.totalorder %s26, 1
        %s295 = scalar_select %p294, %s26, 1
        %s296 = smul.addr %s295, 8
        %s297 = scalar_lea.vmem %s1, %s296
        %p298 = pneg %p73
        %p299 = pneg %p70
        %p300 = pneg %p94
        %p301 = pneg %p91
        %p302 = pneg %p115
        %p303 = pneg %p112
        %p304 = pneg %p136
        %p305 = pneg %p133
        %p306 = pneg %p157
        %p307 = pneg %p154
        %p308 = pneg %p178
        %p309 = pneg %p175
        %p310 = pneg %p204
        %p311 = pneg %p201
        %s312 = sand.u32 %s191, 1
        %s313 = scalar_lea.sflag [#allocation3], %s312
        %s314 = sand.u32 %s191, 1
        %s315 = smul.addr %s314, 8
        %s316 = scalar_lea.vmem [#allocation2], %s315
        %p317 = pneg %p230
        %p318 = pneg %p227
        %s319 = sand.u32 %s217, 1
        %s320 = scalar_lea.sflag [#allocation5], %s319
        %s321 = sand.u32 %s217, 1
        %s322 = smul.addr %s321, 8
        %s323 = scalar_lea.vmem [#allocation4], %s322
        %s324 = smul.u32 16, %s26
        %p325 = scmp.lt.s32.totalorder %s324, 31
        %s326 = scalar_select %p325, %s324, 31
        %s327 = smul.addr %s326, 8
        %s328 = scalar_lea.vmem %s0, %s327
        %s329 = smul.u32 16, %s26
        %p330 = scmp.lt.s32.totalorder %s26, 1
        %s331 = scalar_select %p330, %s26, 1
        %s332 = smul.addr %s331, 8
        %s333 = scalar_lea.vmem %s1, %s332
        %v334 = vld [vmem:[%s328] sm:$0xff]
        %v335 = vld [vmem:[%s328 + $0x8] sm:$0xff]
        %v336 = vld [vmem:[%s328 + $0x10] sm:$0xff]
        %v337 = vld [vmem:[%s328 + $0x18] sm:$0xff]
        %v338 = vld [vmem:[%s328 + $0x20] sm:$0xff]
        %v339 = vld [vmem:[%s328 + $0x28] sm:$0xff]
        %v340 = vld [vmem:[%s328 + $0x30] sm:$0xff]
        %v341 = vld [vmem:[%s328 + $0x38] sm:$0xff]
        %v342 = vld [vmem:[%s328 + $0x40] sm:$0xff]
        %v343 = vld [vmem:[%s328 + $0x48] sm:$0xff]
        %v344 = vld [vmem:[%s328 + $0x50] sm:$0xff]
        %v345 = vld [vmem:[%s328 + $0x58] sm:$0xff]
        %v346 = vld [vmem:[%s328 + $0x60] sm:$0xff]
        %v347 = vld [vmem:[%s328 + $0x68] sm:$0xff]
        %v348 = vld [vmem:[%s328 + $0x70] sm:$0xff]
        %v349 = vld [vmem:[%s328 + $0x78] sm:$0xff]
        %v350 = vld [vmem:[%s2] sm:$0xff]
        %v351 = vld [vmem:[%s2 + $0x8] sm:$0xff]
        %v352 = vld [vmem:[%s2 + $0x10] sm:$0xff]
        %v353 = vld [vmem:[%s2 + $0x18] sm:$0xff]
        %v354 = vld [vmem:[%s3] sm:$0x1]
        %v356 = vlaneseq
        %v357 = vshrl.u32 %v356, 7
        %v358 = vsub.s32 0, %v357
        %v359 = vrot.slane %v354, %v358
        %vm361 = vcmask 261120
        %v363 = vsel %vm361, %v334, 0
        %v366 = vsel %vm361, %v335, 0
        %v369 = vsel %vm361, %v336, 0
        %v372 = vsel %vm361, %v337, 0
        %v375 = vsel %vm361, %v338, 0
        %v378 = vsel %vm361, %v339, 0
        %v381 = vsel %vm361, %v340, 0
        %v384 = vsel %vm361, %v341, 0
        %v387 = vsel %vm361, %v342, 0
        %v390 = vsel %vm361, %v343, 0
        %v393 = vsel %vm361, %v344, 0
        %v396 = vsel %vm361, %v345, 0
        %v399 = vsel %vm361, %v346, 0
        %v402 = vsel %vm361, %v347, 0
        %v405 = vsel %vm361, %v348, 0
        %v408 = vsel %vm361, %v349, 0
        %410 = vmatprep.subr.mxu0 0.0
        %411 = vmatpush1.msra.mxu0 0.0
        %412 = vmatprep.subr.mxu0 0.0
        %413 = vmatpush1.msra.mxu0 0.0
        %414 = vmatprep.subr.mxu0 0.0
        %415 = vmatpush1.msra.mxu0 0.0
        %416 = vmatprep.subr.mxu0 0.0
        %417 = vmatpush1.msra.mxu0 0.0
        %418 = vmatprep.subr.mxu0 0.0
        %419 = vmatpush1.msra.mxu0 0.0
        %420 = vmatprep.subr.mxu0 0.0
        %421 = vmatpush1.msra.mxu0 0.0
        %422 = vmatprep.subr.mxu0 0.0
        %423 = vmatpush1.msra.mxu0 0.0
        %424 = vmatprep.subr.mxu0 0.0
        %425 = vmatpush1.msra.mxu0 0.0
        %426 = vmatprep.subr.mxu0 0.0
        %427 = vmatpush1.msra.mxu0 0.0
        %428 = vmatprep.subr.mxu0 0.0
        %429 = vmatpush1.msra.mxu0 0.0
        %430 = vmatprep.subr.mxu0 0.0
        %431 = vmatpush1.msra.mxu0 0.0
        %432 = vmatprep.subr.mxu0 0.0
        %433 = vmatpush1.msra.mxu0 0.0
        %434 = vmatprep.subr.mxu0 0.0
        %435 = vmatpush1.msra.mxu0 %v353
        %436 = vmatprep.subr.mxu0 0.0
        %437 = vmatpush1.msra.mxu0 %v352
        %438 = vmatprep.subr.mxu0 0.0
        %439 = vmatpush1.msra.mxu0 %v351
        %440 = vmatprep.subr.mxu0 0.0
        %441 = vmatpush1.msra.mxu0 %v350
        %442 = vmatprep.subr.mxu0 0.0
        %443 = vmatpush2.msra.mxu0 0.0
        %444 = vmatprep.subr.mxu0 0.0
        %445 = vmatpush2.msra.mxu0 0.0
        %446 = vmatprep.subr.mxu0 0.0
        %447 = vmatpush2.msra.mxu0 0.0
        %448 = vmatprep.subr.mxu0 0.0
        %449 = vmatpush2.msra.mxu0 0.0
        %450 = vmatprep.subr.mxu0 0.0
        %451 = vmatpush2.msra.mxu0 0.0
        %452 = vmatprep.subr.mxu0 0.0
        %453 = vmatpush2.msra.mxu0 0.0
        %454 = vmatprep.subr.mxu0 0.0
        %455 = vmatpush2.msra.mxu0 0.0
        %456 = vmatprep.subr.mxu0 0.0
        %457 = vmatpush2.msra.mxu0 0.0
        %458 = vmatprep.subr.mxu0 0.0
        %459 = vmatpush2.msra.mxu0 0.0
        %460 = vmatprep.subr.mxu0 0.0
        %461 = vmatpush2.msra.mxu0 0.0
        %462 = vmatprep.subr.mxu0 0.0
        %463 = vmatpush2.msra.mxu0 0.0
        %464 = vmatprep.subr.mxu0 0.0
        %465 = vmatpush2.msra.mxu0 0.0
        %466 = vmatprep.subr.mxu0 0.0
        %467 = vmatpush2.msra.mxu0 0.0
        %468 = vmatprep.subr.mxu0 0.0
        %469 = vmatpush2.msra.mxu0 0.0
        %470 = vmatprep.subr.mxu0 0.0
        %471 = vmatpush2.msra.mxu0 0.0
        %472 = vmatprep.subr.mxu0 0.0
        %473 = vmatpush2.msra.mxu0 0.0
        %474 = vmatprep.mubr.f32.mxu0 0.0
        %475 = vmatmul.mubr.f32.gmra.mxu0 %v363
        %v476 = vpop.f32.mrf.mxu0
        %v477 = vadd.f32 %v359, %v476
        %v478 = vpop.f32.mrf.mxu0
        %479 = vmatprep.mubr.f32.mxu0 0.0
        %480 = vmatmul.mubr.f32.gmra.mxu0 %v366
        %v481 = vpop.f32.mrf.mxu0
        %v482 = vadd.f32 %v359, %v481
        %v483 = vpop.f32.mrf.mxu0
        %484 = vmatprep.mubr.f32.mxu0 0.0
        %485 = vmatmul.mubr.f32.gmra.mxu0 %v369
        %v486 = vpop.f32.mrf.mxu0
        %v487 = vadd.f32 %v359, %v486
        %v488 = vpop.f32.mrf.mxu0
        %489 = vmatprep.mubr.f32.mxu0 0.0
        %490 = vmatmul.mubr.f32.gmra.mxu0 %v372
        %v491 = vpop.f32.mrf.mxu0
        %v492 = vadd.f32 %v359, %v491
        %v493 = vpop.f32.mrf.mxu0
        %494 = vmatprep.mubr.f32.mxu0 0.0
        %495 = vmatmul.mubr.f32.gmra.mxu0 %v375
        %v496 = vpop.f32.mrf.mxu0
        %v497 = vadd.f32 %v359, %v496
        %v498 = vpop.f32.mrf.mxu0
        %499 = vmatprep.mubr.f32.mxu0 0.0
        %500 = vmatmul.mubr.f32.gmra.mxu0 %v378
        %v501 = vpop.f32.mrf.mxu0
        %v502 = vadd.f32 %v359, %v501
        %v503 = vpop.f32.mrf.mxu0
        %504 = vmatprep.mubr.f32.mxu0 0.0
        %505 = vmatmul.mubr.f32.gmra.mxu0 %v381
        %v506 = vpop.f32.mrf.mxu0
        %v507 = vadd.f32 %v359, %v506
        %v508 = vpop.f32.mrf.mxu0
        %509 = vmatprep.mubr.f32.mxu0 0.0
        %510 = vmatmul.mubr.f32.gmra.mxu0 %v384
        %v511 = vpop.f32.mrf.mxu0
        %v512 = vadd.f32 %v359, %v511
        %v513 = vpop.f32.mrf.mxu0
        %514 = vmatprep.mubr.f32.mxu0 0.0
        %515 = vmatmul.mubr.f32.gmra.mxu0 %v387
        %v516 = vpop.f32.mrf.mxu0
        %v517 = vadd.f32 %v359, %v516
        %v518 = vpop.f32.mrf.mxu0
        %519 = vmatprep.mubr.f32.mxu0 0.0
        %520 = vmatmul.mubr.f32.gmra.mxu0 %v390
        %v521 = vpop.f32.mrf.mxu0
        %v522 = vadd.f32 %v359, %v521
        %v523 = vpop.f32.mrf.mxu0
        %524 = vmatprep.mubr.f32.mxu0 0.0
        %525 = vmatmul.mubr.f32.gmra.mxu0 %v393
        %v526 = vpop.f32.mrf.mxu0
        %v527 = vadd.f32 %v359, %v526
        %v528 = vpop.f32.mrf.mxu0
        %529 = vmatprep.mubr.f32.mxu0 0.0
        %530 = vmatmul.mubr.f32.gmra.mxu0 %v396
        %v531 = vpop.f32.mrf.mxu0
        %v532 = vadd.f32 %v359, %v531
        %v533 = vpop.f32.mrf.mxu0
        %534 = vmatprep.mubr.f32.mxu0 0.0
        %535 = vmatmul.mubr.f32.gmra.mxu0 %v399
        %v536 = vpop.f32.mrf.mxu0
        %v537 = vadd.f32 %v359, %v536
        %v538 = vpop.f32.mrf.mxu0
        %539 = vmatprep.mubr.f32.mxu0 0.0
        %540 = vmatmul.mubr.f32.gmra.mxu0 %v402
        %v541 = vpop.f32.mrf.mxu0
        %v542 = vadd.f32 %v359, %v541
        %v543 = vpop.f32.mrf.mxu0
        %544 = vmatprep.mubr.f32.mxu0 0.0
        %545 = vmatmul.mubr.f32.gmra.mxu0 %v405
        %v546 = vpop.f32.mrf.mxu0
        %v547 = vadd.f32 %v359, %v546
        %v548 = vpop.f32.mrf.mxu0
        %549 = vmatprep.mubr.f32.mxu0 0.0
        %550 = vmatmul.mubr.f32.gmra.mxu0 %v408
        %v551 = vpop.f32.mrf.mxu0
        %v552 = vadd.f32 %v359, %v551
        %v553 = vpop.f32.mrf.mxu0
        %554 = vdwg.mxu0
        %v555 = vtanh.pop %v477
        %v556 = vtanh.pop %v482
        %v557 = vtanh.pop %v487
        %v558 = vtanh.pop %v492
        %v559 = vtanh.pop %v497
        %v560 = vtanh.pop %v502
        %v561 = vtanh.pop %v507
        %v562 = vtanh.pop %v512
        %v563 = vtanh.pop %v517
        %v564 = vtanh.pop %v522
        %v565 = vtanh.pop %v527
        %v566 = vtanh.pop %v532
        %v567 = vtanh.pop %v537
        %v568 = vtanh.pop %v542
        %v569 = vtanh.pop %v547
        %v570 = vtanh.pop %v552
        %v571 = vld [vmem:[%s5] sm:$0xff]
        %v572 = vld [vmem:[%s5 + $0x8] sm:$0xff]
        %v573 = vld [vmem:[%s5 + $0x10] sm:$0xff]
        %v574 = vld [vmem:[%s5 + $0x18] sm:$0xff]
        %v576 = vsel %vm361, %v555, 0
        %v579 = vsel %vm361, %v556, 0
        %v582 = vsel %vm361, %v557, 0
        %v585 = vsel %vm361, %v558, 0
        %v588 = vsel %vm361, %v559, 0
        %v591 = vsel %vm361, %v560, 0
        %v594 = vsel %vm361, %v561, 0
        %v597 = vsel %vm361, %v562, 0
        %v600 = vsel %vm361, %v563, 0
        %v603 = vsel %vm361, %v564, 0
        %v606 = vsel %vm361, %v565, 0
        %v609 = vsel %vm361, %v566, 0
        %v612 = vsel %vm361, %v567, 0
        %v615 = vsel %vm361, %v568, 0
        %v618 = vsel %vm361, %v569, 0
        %v621 = vsel %vm361, %v570, 0
        %623 = vmatprep.subr.mxu0 0.0
        %624 = vmatpush1.msra.mxu0 0.0
        %625 = vmatprep.subr.mxu0 0.0
        %626 = vmatpush1.msra.mxu0 0.0
        %627 = vmatprep.subr.mxu0 0.0
        %628 = vmatpush1.msra.mxu0 0.0
        %629 = vmatprep.subr.mxu0 0.0
        %630 = vmatpush1.msra.mxu0 0.0
        %631 = vmatprep.subr.mxu0 0.0
        %632 = vmatpush1.msra.mxu0 0.0
        %633 = vmatprep.subr.mxu0 0.0
        %634 = vmatpush1.msra.mxu0 0.0
        %635 = vmatprep.subr.mxu0 0.0
        %636 = vmatpush1.msra.mxu0 0.0
        %637 = vmatprep.subr.mxu0 0.0
        %638 = vmatpush1.msra.mxu0 0.0
        %639 = vmatprep.subr.mxu0 0.0
        %640 = vmatpush1.msra.mxu0 0.0
        %641 = vmatprep.subr.mxu0 0.0
        %642 = vmatpush1.msra.mxu0 0.0
        %643 = vmatprep.subr.mxu0 0.0
        %644 = vmatpush1.msra.mxu0 0.0
        %645 = vmatprep.subr.mxu0 0.0
        %646 = vmatpush1.msra.mxu0 0.0
        %647 = vmatprep.subr.mxu0 0.0
        %648 = vmatpush1.msra.mxu0 %v574
        %649 = vmatprep.subr.mxu0 0.0
        %650 = vmatpush1.msra.mxu0 %v573
        %651 = vmatprep.subr.mxu0 0.0
        %652 = vmatpush1.msra.mxu0 %v572
        %653 = vmatprep.subr.mxu0 0.0
        %654 = vmatpush1.msra.mxu0 %v571
        %655 = vmatprep.subr.mxu0 0.0
        %656 = vmatpush2.msra.mxu0 0.0
        %657 = vmatprep.subr.mxu0 0.0
        %658 = vmatpush2.msra.mxu0 0.0
        %659 = vmatprep.subr.mxu0 0.0
        %660 = vmatpush2.msra.mxu0 0.0
        %661 = vmatprep.subr.mxu0 0.0
        %662 = vmatpush2.msra.mxu0 0.0
        %663 = vmatprep.subr.mxu0 0.0
        %664 = vmatpush2.msra.mxu0 0.0
        %665 = vmatprep.subr.mxu0 0.0
        %666 = vmatpush2.msra.mxu0 0.0
        %667 = vmatprep.subr.mxu0 0.0
        %668 = vmatpush2.msra.mxu0 0.0
        %669 = vmatprep.subr.mxu0 0.0
        %670 = vmatpush2.msra.mxu0 0.0
        %671 = vmatprep.subr.mxu0 0.0
        %672 = vmatpush2.msra.mxu0 0.0
        %673 = vmatprep.subr.mxu0 0.0
        %674 = vmatpush2.msra.mxu0 0.0
        %675 = vmatprep.subr.mxu0 0.0
        %676 = vmatpush2.msra.mxu0 0.0
        %677 = vmatprep.subr.mxu0 0.0
        %678 = vmatpush2.msra.mxu0 0.0
        %679 = vmatprep.subr.mxu0 0.0
        %680 = vmatpush2.msra.mxu0 0.0
        %681 = vmatprep.subr.mxu0 0.0
        %682 = vmatpush2.msra.mxu0 0.0
        %683 = vmatprep.subr.mxu0 0.0
        %684 = vmatpush2.msra.mxu0 0.0
        %685 = vmatprep.subr.mxu0 0.0
        %686 = vmatpush2.msra.mxu0 0.0
        %687 = vmatprep.mubr.f32.mxu0 0.0
        %688 = vmatmul.mubr.f32.gmra.mxu0 %v576
        %v689 = vpop.f32.mrf.mxu0
        %v690 = vadd.f32 0.0, %v689
        %v691 = vpop.f32.mrf.mxu0
        %692 = vmatprep.mubr.f32.mxu0 0.0
        %693 = vmatmul.mubr.f32.gmra.mxu0 %v579
        %v694 = vpop.f32.mrf.mxu0
        %v695 = vadd.f32 0.0, %v694
        %v696 = vpop.f32.mrf.mxu0
        %697 = vmatprep.mubr.f32.mxu0 0.0
        %698 = vmatmul.mubr.f32.gmra.mxu0 %v582
        %v699 = vpop.f32.mrf.mxu0
        %v700 = vadd.f32 0.0, %v699
        %v701 = vpop.f32.mrf.mxu0
        %702 = vmatprep.mubr.f32.mxu0 0.0
        %703 = vmatmul.mubr.f32.gmra.mxu0 %v585
        %v704 = vpop.f32.mrf.mxu0
        %v705 = vadd.f32 0.0, %v704
        %v706 = vpop.f32.mrf.mxu0
        %707 = vmatprep.mubr.f32.mxu0 0.0
        %708 = vmatmul.mubr.f32.gmra.mxu0 %v588
        %v709 = vpop.f32.mrf.mxu0
        %v710 = vadd.f32 0.0, %v709
        %v711 = vpop.f32.mrf.mxu0
        %712 = vmatprep.mubr.f32.mxu0 0.0
        %713 = vmatmul.mubr.f32.gmra.mxu0 %v591
        %v714 = vpop.f32.mrf.mxu0
        %v715 = vadd.f32 0.0, %v714
        %v716 = vpop.f32.mrf.mxu0
        %717 = vmatprep.mubr.f32.mxu0 0.0
        %718 = vmatmul.mubr.f32.gmra.mxu0 %v594
        %v719 = vpop.f32.mrf.mxu0
        %v720 = vadd.f32 0.0, %v719
        %v721 = vpop.f32.mrf.mxu0
        %722 = vmatprep.mubr.f32.mxu0 0.0
        %723 = vmatmul.mubr.f32.gmra.mxu0 %v597
        %v724 = vpop.f32.mrf.mxu0
        %v725 = vadd.f32 0.0, %v724
        %v726 = vpop.f32.mrf.mxu0
        %727 = vmatprep.mubr.f32.mxu0 0.0
        %728 = vmatmul.mubr.f32.gmra.mxu0 %v600
        %v729 = vpop.f32.mrf.mxu0
        %v730 = vadd.f32 0.0, %v729
        %v731 = vpop.f32.mrf.mxu0
        %732 = vmatprep.mubr.f32.mxu0 0.0
        %733 = vmatmul.mubr.f32.gmra.mxu0 %v603
        %v734 = vpop.f32.mrf.mxu0
        %v735 = vadd.f32 0.0, %v734
        %v736 = vpop.f32.mrf.mxu0
        %737 = vmatprep.mubr.f32.mxu0 0.0
        %738 = vmatmul.mubr.f32.gmra.mxu0 %v606
        %v739 = vpop.f32.mrf.mxu0
        %v740 = vadd.f32 0.0, %v739
        %v741 = vpop.f32.mrf.mxu0
        %742 = vmatprep.mubr.f32.mxu0 0.0
        %743 = vmatmul.mubr.f32.gmra.mxu0 %v609
        %v744 = vpop.f32.mrf.mxu0
        %v745 = vadd.f32 0.0, %v744
        %v746 = vpop.f32.mrf.mxu0
        %747 = vmatprep.mubr.f32.mxu0 0.0
        %748 = vmatmul.mubr.f32.gmra.mxu0 %v612
        %v749 = vpop.f32.mrf.mxu0
        %v750 = vadd.f32 0.0, %v749
        %v751 = vpop.f32.mrf.mxu0
        %752 = vmatprep.mubr.f32.mxu0 0.0
        %753 = vmatmul.mubr.f32.gmra.mxu0 %v615
        %v754 = vpop.f32.mrf.mxu0
        %v755 = vadd.f32 0.0, %v754
        %v756 = vpop.f32.mrf.mxu0
        %757 = vmatprep.mubr.f32.mxu0 0.0
        %758 = vmatmul.mubr.f32.gmra.mxu0 %v618
        %v759 = vpop.f32.mrf.mxu0
        %v760 = vadd.f32 0.0, %v759
        %v761 = vpop.f32.mrf.mxu0
        %762 = vmatprep.mubr.f32.mxu0 0.0
        %763 = vmatmul.mubr.f32.gmra.mxu0 %v621
        %v764 = vpop.f32.mrf.mxu0
        %v765 = vadd.f32 0.0, %v764
        %v766 = vpop.f32.mrf.mxu0
        %767 = vdwg.mxu0
        %v768 = vld [vmem:[%s4] sm:$0x1]
        %v770 = vlaneseq
        %v771 = vshrl.u32 %v770, 7
        %v772 = vsub.s32 0, %v771
        %v773 = vrot.slane %v768, %v772
        %v775 = vmul.f32 %v555, %v773
        %v776 = vmul.f32 %v556, %v773
        %v777 = vmul.f32 %v557, %v773
        %v778 = vmul.f32 %v558, %v773
        %v779 = vmul.f32 %v559, %v773
        %v780 = vmul.f32 %v560, %v773
        %v781 = vmul.f32 %v561, %v773
        %v782 = vmul.f32 %v562, %v773
        %v783 = vmul.f32 %v563, %v773
        %v784 = vmul.f32 %v564, %v773
        %v785 = vmul.f32 %v565, %v773
        %v786 = vmul.f32 %v566, %v773
        %v787 = vmul.f32 %v567, %v773
        %v788 = vmul.f32 %v568, %v773
        %v789 = vmul.f32 %v569, %v773
        %v790 = vmul.f32 %v570, %v773
        %v791 = vsel %vm361, %v775, 0.0
        %792 = vadd.xlane.f32.xlu0 %v791
        %v793 = vpop.xlane.xlu0 %792
        %v794 = vsel %vm361, %v776, 0.0
        %795 = vadd.xlane.f32.xlu0 %v794
        %v796 = vpop.xlane.xlu0 %795
        %v797 = vsel %vm361, %v777, 0.0
        %798 = vadd.xlane.f32.xlu0 %v797
        %v799 = vpop.xlane.xlu0 %798
        %v800 = vsel %vm361, %v778, 0.0
        %801 = vadd.xlane.f32.xlu0 %v800
        %v802 = vpop.xlane.xlu0 %801
        %v803 = vsel %vm361, %v779, 0.0
        %804 = vadd.xlane.f32.xlu0 %v803
        %v805 = vpop.xlane.xlu0 %804
        %v806 = vsel %vm361, %v780, 0.0
        %807 = vadd.xlane.f32.xlu0 %v806
        %v808 = vpop.xlane.xlu0 %807
        %v809 = vsel %vm361, %v781, 0.0
        %810 = vadd.xlane.f32.xlu0 %v809
        %v811 = vpop.xlane.xlu0 %810
        %v812 = vsel %vm361, %v782, 0.0
        %813 = vadd.xlane.f32.xlu0 %v812
        %v814 = vpop.xlane.xlu0 %813
        %v815 = vsel %vm361, %v783, 0.0
        %816 = vadd.xlane.f32.xlu0 %v815
        %v817 = vpop.xlane.xlu0 %816
        %v818 = vsel %vm361, %v784, 0.0
        %819 = vadd.xlane.f32.xlu0 %v818
        %v820 = vpop.xlane.xlu0 %819
        %v821 = vsel %vm361, %v785, 0.0
        %822 = vadd.xlane.f32.xlu0 %v821
        %v823 = vpop.xlane.xlu0 %822
        %v824 = vsel %vm361, %v786, 0.0
        %825 = vadd.xlane.f32.xlu0 %v824
        %v826 = vpop.xlane.xlu0 %825
        %v827 = vsel %vm361, %v787, 0.0
        %828 = vadd.xlane.f32.xlu0 %v827
        %v829 = vpop.xlane.xlu0 %828
        %v830 = vsel %vm361, %v788, 0.0
        %831 = vadd.xlane.f32.xlu0 %v830
        %v832 = vpop.xlane.xlu0 %831
        %v833 = vsel %vm361, %v789, 0.0
        %834 = vadd.xlane.f32.xlu0 %v833
        %v835 = vpop.xlane.xlu0 %834
        %v836 = vsel %vm361, %v790, 0.0
        %837 = vadd.xlane.f32.xlu0 %v836
        %v838 = vpop.xlane.xlu0 %837
        %v839 = vld [vmem:[%s333] sm:$0xff]
        %vm840 = vcmp.gt.f32.partialorder %v839, 0.5
        %v857 = vlaneseq
        %v858 = vand.u32 %v857, 127
        %v859 = vlaneseq
        %v860 = vshrl.u32 %v859, 7
        %v861 = vsub.s32 %v858, %v860
        %v862 = vrot.slane %v793, %v861
        %v863 = vadd.s32 %v858, 4294967288
        %v864 = vlaneseq
        %v865 = vshrl.u32 %v864, 7
        %v866 = vsub.s32 %v863, %v865
        %v867 = vrot.slane %v796, %v866
        %vm868 = vcmask 130112
        %v869 = vsel %vm868, %v867, %v862
        %v870 = vlaneseq
        %v871 = vshrl.u32 %v870, 7
        %v872 = vsub.s32 %v858, %v871
        %v873 = vrot.slane %v799, %v872
        %v874 = vlaneseq
        %v875 = vshrl.u32 %v874, 7
        %v876 = vsub.s32 %v863, %v875
        %v877 = vrot.slane %v802, %v876
        %v878 = vsel %vm868, %v877, %v873
        %v879 = vlaneseq
        %v880 = vshrl.u32 %v879, 7
        %v881 = vsub.s32 %v858, %v880
        %v882 = vrot.slane %v805, %v881
        %v883 = vlaneseq
        %v884 = vshrl.u32 %v883, 7
        %v885 = vsub.s32 %v863, %v884
        %v886 = vrot.slane %v808, %v885
        %v887 = vsel %vm868, %v886, %v882
        %v888 = vlaneseq
        %v889 = vshrl.u32 %v888, 7
        %v890 = vsub.s32 %v858, %v889
        %v891 = vrot.slane %v811, %v890
        %v892 = vlaneseq
        %v893 = vshrl.u32 %v892, 7
        %v894 = vsub.s32 %v863, %v893
        %v895 = vrot.slane %v814, %v894
        %v896 = vsel %vm868, %v895, %v891
        %v897 = vlaneseq
        %v898 = vshrl.u32 %v897, 7
        %v899 = vsub.s32 %v858, %v898
        %v900 = vrot.slane %v817, %v899
        %v901 = vlaneseq
        %v902 = vshrl.u32 %v901, 7
        %v903 = vsub.s32 %v863, %v902
        %v904 = vrot.slane %v820, %v903
        %v905 = vsel %vm868, %v904, %v900
        %v906 = vlaneseq
        %v907 = vshrl.u32 %v906, 7
        %v908 = vsub.s32 %v858, %v907
        %v909 = vrot.slane %v823, %v908
        %v910 = vlaneseq
        %v911 = vshrl.u32 %v910, 7
        %v912 = vsub.s32 %v863, %v911
        %v913 = vrot.slane %v826, %v912
        %v914 = vsel %vm868, %v913, %v909
        %v915 = vlaneseq
        %v916 = vshrl.u32 %v915, 7
        %v917 = vsub.s32 %v858, %v916
        %v918 = vrot.slane %v829, %v917
        %v919 = vlaneseq
        %v920 = vshrl.u32 %v919, 7
        %v921 = vsub.s32 %v863, %v920
        %v922 = vrot.slane %v832, %v921
        %v923 = vsel %vm868, %v922, %v918
        %v924 = vlaneseq
        %v925 = vshrl.u32 %v924, 7
        %v926 = vsub.s32 %v858, %v925
        %v927 = vrot.slane %v835, %v926
        %v928 = vlaneseq
        %v929 = vshrl.u32 %v928, 7
        %v930 = vsub.s32 %v863, %v929
        %v931 = vrot.slane %v838, %v930
        %v932 = vsel %vm868, %v931, %v927
        %vm933 = vcmask 1041409
        %v934 = vsel %vm933, %v878, %v869
        %vm935 = vcmask 1042434
        %v936 = vsel %vm935, %v887, %v934
        %vm937 = vcmask 1043459
        %v938 = vsel %vm937, %v896, %v936
        %vm939 = vcmask 1044484
        %v940 = vsel %vm939, %v905, %v938
        %vm941 = vcmask 1045509
        %v942 = vsel %vm941, %v914, %v940
        %vm943 = vcmask 1046534
        %v944 = vsel %vm943, %v923, %v942
        %vm945 = vcmask 1047559
        %v946 = vsel %vm945, %v932, %v944
        %v948 = vsel %vm840, %v946, -1e+30
        %vm949 = vcmask 130048
        %v950 = vsel %vm949, %v948, -inf
        %951 = vmax.xlane.f32.xlu0 %v950
        %v952 = vpop.xlane.xlu0 %951
        %v953 = vsub.f32 %v948, %v952
        %v954 = vmul.f32 %v953, 1.442695
        %v955 = vpow.pop %v954
        %v956 = vsel %vm949, %v955, 0.0
        %957 = vadd.xlane.f32.xlu0 %v956
        %v958 = vpop.xlane.xlu0 %957
        %v959 = vrcp.pop %v958
        %v960 = vmul.f32 %v955, %v959
        %961 = vst.msk [vmem:[%s323] sm:$0xff] %vm949, %v960
        %v962 = vlaneseq
        %v963 = vshrl.u32 %v962, 7
        %v964 = vsub.s32 0, %v963
        %v965 = vrot.slane %v960, %v964
        %967 = vbcast.lane.b32.xlu0 %v965, 256
        %v968 = vpop.permute.xlu0 %967
        %s970 = sor.u32 256, 8
        %971 = vbcast.lane.b32.xlu0 %v965, %s970
        %v972 = vpop.permute.xlu0 %971
        %v973 = vlaneseq
        %v974 = vshrl.u32 %v973, 7
        %v975 = vsub.s32 1, %v974
        %v976 = vrot.slane %v960, %v975
        %978 = vbcast.lane.b32.xlu0 %v976, 256
        %v979 = vpop.permute.xlu0 %978
        %s981 = sor.u32 256, 8
        %982 = vbcast.lane.b32.xlu0 %v976, %s981
        %v983 = vpop.permute.xlu0 %982
        %v984 = vlaneseq
        %v985 = vshrl.u32 %v984, 7
        %v986 = vsub.s32 2, %v985
        %v987 = vrot.slane %v960, %v986
        %989 = vbcast.lane.b32.xlu0 %v987, 256
        %v990 = vpop.permute.xlu0 %989
        %s992 = sor.u32 256, 8
        %993 = vbcast.lane.b32.xlu0 %v987, %s992
        %v994 = vpop.permute.xlu0 %993
        %v995 = vlaneseq
        %v996 = vshrl.u32 %v995, 7
        %v997 = vsub.s32 3, %v996
        %v998 = vrot.slane %v960, %v997
        %1000 = vbcast.lane.b32.xlu0 %v998, 256
        %v1001 = vpop.permute.xlu0 %1000
        %s1003 = sor.u32 256, 8
        %1004 = vbcast.lane.b32.xlu0 %v998, %s1003
        %v1005 = vpop.permute.xlu0 %1004
        %v1006 = vlaneseq
        %v1007 = vshrl.u32 %v1006, 7
        %v1008 = vsub.s32 4, %v1007
        %v1009 = vrot.slane %v960, %v1008
        %1011 = vbcast.lane.b32.xlu0 %v1009, 256
        %v1012 = vpop.permute.xlu0 %1011
        %s1014 = sor.u32 256, 8
        %1015 = vbcast.lane.b32.xlu0 %v1009, %s1014
        %v1016 = vpop.permute.xlu0 %1015
        %v1017 = vlaneseq
        %v1018 = vshrl.u32 %v1017, 7
        %v1019 = vsub.s32 5, %v1018
        %v1020 = vrot.slane %v960, %v1019
        %1022 = vbcast.lane.b32.xlu0 %v1020, 256
        %v1023 = vpop.permute.xlu0 %1022
        %s1025 = sor.u32 256, 8
        %1026 = vbcast.lane.b32.xlu0 %v1020, %s1025
        %v1027 = vpop.permute.xlu0 %1026
        %v1028 = vlaneseq
        %v1029 = vshrl.u32 %v1028, 7
        %v1030 = vsub.s32 6, %v1029
        %v1031 = vrot.slane %v960, %v1030
        %1033 = vbcast.lane.b32.xlu0 %v1031, 256
        %v1034 = vpop.permute.xlu0 %1033
        %s1036 = sor.u32 256, 8
        %1037 = vbcast.lane.b32.xlu0 %v1031, %s1036
        %v1038 = vpop.permute.xlu0 %1037
        %v1039 = vlaneseq
        %v1040 = vshrl.u32 %v1039, 7
        %v1041 = vsub.s32 7, %v1040
        %v1042 = vrot.slane %v960, %v1041
        %1044 = vbcast.lane.b32.xlu0 %v1042, 256
        %v1045 = vpop.permute.xlu0 %1044
        %s1047 = sor.u32 256, 8
        %1048 = vbcast.lane.b32.xlu0 %v1042, %s1047
        %v1049 = vpop.permute.xlu0 %1048
        %v1050 = vmul.f32 %v968, %v690
        %v1051 = vmul.f32 %v972, %v695
        %v1052 = vmul.f32 %v979, %v700
        %v1053 = vmul.f32 %v983, %v705
        %v1054 = vmul.f32 %v990, %v710
        %v1055 = vmul.f32 %v994, %v715
        %v1056 = vmul.f32 %v1001, %v720
        %v1057 = vmul.f32 %v1005, %v725
        %v1058 = vmul.f32 %v1012, %v730
        %v1059 = vmul.f32 %v1016, %v735
        %v1060 = vmul.f32 %v1023, %v740
        %v1061 = vmul.f32 %v1027, %v745
        %v1062 = vmul.f32 %v1034, %v750
        %v1063 = vmul.f32 %v1038, %v755
        %v1064 = vmul.f32 %v1045, %v760
        %v1065 = vmul.f32 %v1049, %v765
        %v1066 = vadd.f32 %v1050, %v1051
        %v1067 = vrot.slane %v1066, 4
        %v1068 = vadd.f32 %v1066, %v1067
        %v1069 = vrot.slane %v1068, 2
        %v1070 = vadd.f32 %v1068, %v1069
        %v1071 = vrot.slane %v1070, 1
        %v1072 = vadd.f32 %v1070, %v1071
        %v1073 = vadd.f32 %v1052, %v1053
        %v1074 = vrot.slane %v1073, 4
        %v1075 = vadd.f32 %v1073, %v1074
        %v1076 = vrot.slane %v1075, 2
        %v1077 = vadd.f32 %v1075, %v1076
        %v1078 = vrot.slane %v1077, 1
        %v1079 = vadd.f32 %v1077, %v1078
        %v1080 = vadd.f32 %v1054, %v1055
        %v1081 = vrot.slane %v1080, 4
        %v1082 = vadd.f32 %v1080, %v1081
        %v1083 = vrot.slane %v1082, 2
        %v1084 = vadd.f32 %v1082, %v1083
        %v1085 = vrot.slane %v1084, 1
        %v1086 = vadd.f32 %v1084, %v1085
        %v1087 = vadd.f32 %v1056, %v1057
        %v1088 = vrot.slane %v1087, 4
        %v1089 = vadd.f32 %v1087, %v1088
        %v1090 = vrot.slane %v1089, 2
        %v1091 = vadd.f32 %v1089, %v1090
        %v1092 = vrot.slane %v1091, 1
        %v1093 = vadd.f32 %v1091, %v1092
        %v1094 = vadd.f32 %v1058, %v1059
        %v1095 = vrot.slane %v1094, 4
        %v1096 = vadd.f32 %v1094, %v1095
        %v1097 = vrot.slane %v1096, 2
        %v1098 = vadd.f32 %v1096, %v1097
        %v1099 = vrot.slane %v1098, 1
        %v1100 = vadd.f32 %v1098, %v1099
        %v1101 = vadd.f32 %v1060, %v1061
        %v1102 = vrot.slane %v1101, 4
        %v1103 = vadd.f32 %v1101, %v1102
        %v1104 = vrot.slane %v1103, 2
        %v1105 = vadd.f32 %v1103, %v1104
        %v1106 = vrot.slane %v1105, 1
        %v1107 = vadd.f32 %v1105, %v1106
        %v1108 = vadd.f32 %v1062, %v1063
        %v1109 = vrot.slane %v1108, 4
        %v1110 = vadd.f32 %v1108, %v1109
        %v1111 = vrot.slane %v1110, 2
        %v1112 = vadd.f32 %v1110, %v1111
        %v1113 = vrot.slane %v1112, 1
        %v1114 = vadd.f32 %v1112, %v1113
        %v1115 = vadd.f32 %v1064, %v1065
        %v1116 = vrot.slane %v1115, 4
        %v1117 = vadd.f32 %v1115, %v1116
        %v1118 = vrot.slane %v1117, 2
        %v1119 = vadd.f32 %v1117, %v1118
        %v1120 = vrot.slane %v1119, 1
        %v1121 = vadd.f32 %v1119, %v1120
        %v1122 = vld [vmem:[%s6] sm:$0x1]
        %v1124 = vlaneseq
        %v1125 = vshrl.u32 %v1124, 7
        %v1126 = vsub.s32 0, %v1125
        %v1127 = vrot.slane %v1122, %v1126
        %v1129 = vadd.f32 %v1072, %v1127
        %v1130 = vadd.f32 %v1079, %v1127
        %v1131 = vadd.f32 %v1086, %v1127
        %v1132 = vadd.f32 %v1093, %v1127
        %v1133 = vadd.f32 %v1100, %v1127
        %v1134 = vadd.f32 %v1107, %v1127
        %v1135 = vadd.f32 %v1114, %v1127
        %v1136 = vadd.f32 %v1121, %v1127
        %v1145 = vrot.slane %v1130, 7
        %v1146 = vsel %vm933, %v1145, %v1129
        %v1147 = vrot.slane %v1131, 6
        %v1148 = vsel %vm935, %v1147, %v1146
        %v1149 = vrot.slane %v1132, 5
        %v1150 = vsel %vm937, %v1149, %v1148
        %v1151 = vrot.slane %v1133, 4
        %v1152 = vsel %vm939, %v1151, %v1150
        %v1153 = vrot.slane %v1134, 3
        %v1154 = vsel %vm941, %v1153, %v1152
        %v1155 = vrot.slane %v1135, 2
        %v1156 = vsel %vm943, %v1155, %v1154
        %v1157 = vrot.slane %v1136, 1
        %v1158 = vsel %vm945, %v1157, %v1156
        %1160 = vst [vmem:[%s316] sm:$0xff] %v1158
        %s1161 = sand.u32 %s191, 1
        %s1162 = scalar_lea.sflag [#allocation3], %s1161
        %s1163 = sand.u32 %s191, 1
        %s1164 = smul.addr %s1163, 8
        %s1165 = scalar_lea.vmem [#allocation2], %s1164
        %s1166 = sand.u32 %s217, 1
        %s1167 = scalar_lea.sflag [#allocation5], %s1166
        %s1168 = sand.u32 %s217, 1
        %s1169 = smul.addr %s1168, 8
        %s1170 = scalar_lea.vmem [#allocation4], %s1169
        // Predicated region
        $region49: #{tpu_custom_call.1} parent=47 // pred_check
          %p1171 = pneg %p201
        $region50: #{tpu_custom_call.1} parent=47 // pred_check_branch
          %1173 = sbr.rel (%p1171) target = $region52
        $region51: #{tpu_custom_call.1} parent=47 // pred_region
          %s1175 = ssub.s32 128, 128
          %1176 = vsyncadd %s1162, %s1175
          %s1177 = smul.addr %s26, 128
          %s1178 = scalar_lea.hbm %s7, %s1177
          %s1180 = sshll.u32 %s1165, 4
          %s1181 = int_to_ptr.vmem [resolvable:$true] %s1180
          %1183 = dma.vmem_to_hbm [thread:$0]  %s1181, 128, %s1178, %s1162
        $region52: #{tpu_custom_call.1} parent=47 // pred_fallthru
          _
        // Predicated region
        $region53: #{tpu_custom_call.1} parent=47 // pred_check
          %p1184 = pneg %p227
        $region54: #{tpu_custom_call.1} parent=47 // pred_check_branch
          %1186 = sbr.rel (%p1184) target = $region56
        $region55: #{tpu_custom_call.1} parent=47 // pred_region
          %s1188 = ssub.s32 128, 128
          %1189 = vsyncadd %s1167, %s1188
          %s1190 = smul.addr %s26, 128
          %s1191 = scalar_lea.hbm %s8, %s1190
          %s1193 = sshll.u32 %s1170, 4
          %s1194 = int_to_ptr.vmem [resolvable:$true] %s1193
          %1196 = dma.vmem_to_hbm [thread:$0]  %s1194, 128, %s1191, %s1167
        $region56: #{tpu_custom_call.1} parent=47 // pred_fallthru
          _
      $region48: #{tpu_custom_call.1} parent=5 // pred_fallthru
        _
      %p1197 = scmp.le.s32.totalorder 2, %s21
      // Predicated region
      $region57: #{tpu_custom_call.1} parent=5 // pred_check
        %p1198 = pneg %p1197
      $region58: #{tpu_custom_call.1} parent=5 // pred_check_branch
        %1200 = sbr.rel (%p1198) target = $region60
      $region59: #{tpu_custom_call.1} parent=5 // pred_region
        %s1201 = ssub.s32 %s21, 2
        // Predicated region
        $region61: #{tpu_custom_call.1} parent=59 // pred_check
          %p1202 = pneg %p207
        $region62: #{tpu_custom_call.1} parent=59 // pred_check_branch
          %1204 = sbr.rel (%p1202) target = $region64
        $region63: #{tpu_custom_call.1} parent=59 // pred_region
          %s1205 = sand.u32 %s192, 1
          %s1206 = scalar_lea.sflag [#allocation3], %s1205
          %s1207 = sand.u32 %s192, 1
          %s1208 = smul.addr %s1207, 8
          %s1209 = scalar_lea.vmem [#allocation2], %s1208
          %1210 = dma.done %s1206, 128
        $region64: #{tpu_custom_call.1} parent=59 // pred_fallthru
          _
        // Predicated region
        $region65: #{tpu_custom_call.1} parent=59 // pred_check
          %p1211 = pneg %p233
        $region66: #{tpu_custom_call.1} parent=59 // pred_check_branch
          %1213 = sbr.rel (%p1211) target = $region68
        $region67: #{tpu_custom_call.1} parent=59 // pred_region
          %s1214 = sand.u32 %s218, 1
          %s1215 = scalar_lea.sflag [#allocation5], %s1214
          %s1216 = sand.u32 %s218, 1
          %s1217 = smul.addr %s1216, 8
          %s1218 = scalar_lea.vmem [#allocation4], %s1217
          %1219 = dma.done %s1215, 128
        $region68: #{tpu_custom_call.1} parent=59 // pred_fallthru
          _
      $region60: #{tpu_custom_call.1} parent=5 // pred_fallthru
        _
    $region6: #{tpu_custom_call.1} parent=1 // loop_footer
      %s25 = sadd.s32 1, %s21
    $region7: #{tpu_custom_call.1} parent=1 // loop_footer_branch
      %20 = sbr.rel target = $region3
    $region8: #{tpu_custom_call.1} parent=1 // loop_exit
      _
    %1220 = vsyncpa [#allocation3], 1
    %s1221 = scalar_lea.sflag [#allocation3], 1
    %1222 = vsyncpa %s1221, 1
    %1223 = vsyncpa [#allocation5], 1
    %s1224 = scalar_lea.sflag [#allocation5], 1
    %1225 = vsyncpa %s1224, 1

</llo_original>
